<compile_context>
chip_gen: v7x
topology: tpu7x:2x2x1
jax: 0.10.0
libtpu: 0.0.40
codegen_flags: <defaults>
</compile_context>

<pallas_src>
import jax
import jax.numpy as jnp
from jax.experimental import pallas as pl
from jax.experimental.pallas import tpu as pltpu


def _broadcast_kernel(ctx_ref, out_ref):
    # ctx_ref:  (1, ...) resident parameter slab in VMEM (same block every grid step)
    # out_ref:  (Bt, ...) output block for the current batch tile
    out_ref[...] = jnp.broadcast_to(ctx_ref[...], out_ref.shape)


def _pick_bt_lane_dense(batch, per_batch_bytes, target_bytes):
    """Batch tile for the 2-D (B, E) layout. Must be == B or a multiple of 8."""
    if batch * per_batch_bytes <= target_bytes:
        return batch                      # whole batch in one block
    bt = target_bytes // per_batch_bytes
    if bt < 8:
        return None                       # can't satisfy the (8, ...) rule -> use 3-D path
    bt = (bt // 8) * 8
    bt = min(bt, batch)
    if bt == batch:
        return batch
    # Prefer a tile that divides the batch evenly (avoids a ragged tail block).
    for cand in range(bt, 7, -8):
        if batch % cand == 0:
            return cand
    return bt                             # ragged tail: Pallas masks the partial write


def _pick_bt_3d(batch, per_batch_bytes, target_bytes):
    """Batch tile for the 3-D (B, L*N, D) layout (last two block dims = full dims)."""
    bt = int(max(1, min(batch, target_bytes // per_batch_bytes)))
    for cand in range(bt, 0, -1):
        if batch % cand == 0:
            return cand
    return 1


def vpt_deep_prompt_learner_forward(ctx, batch_size, *, out_dtype=None,
                                    target_block_bytes=2 << 20):
    """Equivalent of VPTDeepPromptLearner.forward(batch_size).

    ctx:  (bottom_limit, n_ctx, ctx_dim) array (the nn.Parameter).
    returns (batch_size, bottom_limit, n_ctx, ctx_dim), dtype = ctx.dtype (or out_dtype).
    """
    if out_dtype is not None and out_dtype != ctx.dtype:
        # Tiny parameter cast in the wrapper; halves the HBM write of the broadcast.
        ctx = ctx.astype(out_dtype)

    L, N, D = ctx.shape
    E = L * N * D
    itemsize = jnp.dtype(ctx.dtype).itemsize
    per_batch_bytes = E * itemsize

    compiler_params = pltpu.CompilerParams(dimension_semantics=("parallel",))

    bt = None
    if E % 128 == 0:
        bt = _pick_bt_lane_dense(batch_size, per_batch_bytes, target_block_bytes)

    if bt is not None:
        # Lane-dense path: per-batch slab flattened onto the lane axis (multiple of 128).
        ctx_flat = ctx.reshape(1, E)
        grid = (pl.cdiv(batch_size, bt),)
        out = pl.pallas_call(
            _broadcast_kernel,
            out_shape=jax.ShapeDtypeStruct((batch_size, E), ctx.dtype),
            grid_spec=pltpu.PrefetchScalarGridSpec(
                num_scalar_prefetch=0,
                grid=grid,
                in_specs=[
                    # Constant block index -> ctx DMA'd from HBM once, held resident.
                    pl.BlockSpec((1, E), lambda b: (0, 0)),
                ],
                out_specs=pl.BlockSpec((bt, E), lambda b: (b, 0)),
            ),
            compiler_params=compiler_params,
        )(ctx_flat)
    else:
        # Safe fallback: last two block dims equal the full array dims, any Bt legal.
        R = L * N
        bt = _pick_bt_3d(batch_size, per_batch_bytes, target_block_bytes)
        ctx_flat = ctx.reshape(1, R, D)
        grid = (pl.cdiv(batch_size, bt),)
        out = pl.pallas_call(
            _broadcast_kernel,
            out_shape=jax.ShapeDtypeStruct((batch_size, R, D), ctx.dtype),
            grid_spec=pltpu.PrefetchScalarGridSpec(
                num_scalar_prefetch=0,
                grid=grid,
                in_specs=[
                    pl.BlockSpec((1, R, D), lambda b: (0, 0, 0)),
                ],
                out_specs=pl.BlockSpec((bt, R, D), lambda b: (b, 0, 0)),
            ),
            compiler_params=compiler_params,
        )(ctx_flat)

    # Free (metadata-only) reshape back to the module's output layout.
    return out.reshape(batch_size, L, N, D)


if __name__ == "__main__":
    # Synthetic config consistent with the module's __init__:
    #   bottom_limit = BOTTOMLIMIT - 1, n_ctx = N_CTX, ctx_dim = visual.conv1.out_channels
    bottom_limit = 3     # e.g. BOTTOMLIMIT = 4
    n_ctx = 8            # N_CTX
    ctx_dim = 32         # conv1.out_channels (small synthetic size)
    batch_size = 2

    # Deterministic init: nn.init.normal_(ctx_vectors, std=0.02)
    key = jax.random.PRNGKey(0)
    ctx = (0.02 * jax.random.normal(key, (bottom_limit, n_ctx, ctx_dim))).astype(jnp.float32)

    # --- main case (lane-dense path, single block: Bt = batch_size) ---
    out = vpt_deep_prompt_learner_forward(ctx, batch_size)
    out = jax.block_until_ready(out)
    ref = jnp.broadcast_to(ctx[None], (batch_size, bottom_limit, n_ctx, ctx_dim))
    assert out.shape == (batch_size, bottom_limit, n_ctx, ctx_dim)
    assert out.dtype == ctx.dtype
    assert bool(jnp.array_equal(out, ref))

    # --- exercise the lane-dense multi-step path (grid > 1, Bt multiple of 8) ---
    b2 = 16
    out2 = jax.block_until_ready(
        vpt_deep_prompt_learner_forward(ctx, b2, target_block_bytes=8 * 3 * 8 * 32 * 4))
    ref2 = jnp.broadcast_to(ctx[None], (b2, bottom_limit, n_ctx, ctx_dim))
    assert bool(jnp.array_equal(out2, ref2))

    # --- exercise the 3-D fallback path (tiny block budget forces Bt < 8) ---
    out3 = jax.block_until_ready(
        vpt_deep_prompt_learner_forward(ctx, b2, target_block_bytes=4096))
    assert bool(jnp.array_equal(out3, ref2))

    print("KERNEL_OK")
</pallas_src>

<mosaic_0001>
module attributes {stable_mosaic.version = 11 : i64} {
  func.func @_broadcast_kernel(%arg0: i32, %arg1: memref<1x768xf32, #tpu.memory_space<vmem>>, %arg2: memref<2x768xf32, #tpu.memory_space<vmem>>) attributes {dimension_semantics = [#tpu.dimension_semantics<parallel>], iteration_bounds = array<i64: 1>, scalar_prefetch = 0 : i64, scratch_operands = 0 : i64, tpu.core_type = #tpu.core_type<tc>, window_params = [{pipeline_mode = #tpu.pipeline_mode<synchronous>, transform_indices = @transform_0, window_bounds = array<i64: 1, 768>}, {transform_indices = @transform_1, window_bounds = array<i64: 2, 768>}]} {
    %c0 = arith.constant 0 : index
    %c0_0 = arith.constant 0 : index
    %0 = vector.load %arg1[%c0, %c0_0] : memref<1x768xf32, #tpu.memory_space<vmem>>, vector<1x768xf32>
    %1 = vector.shape_cast %0 : vector<1x768xf32> to vector<1x768xf32>
    %2 = vector.broadcast %1 : vector<1x768xf32> to vector<2x768xf32>
    %c0_1 = arith.constant 0 : index
    %c0_2 = arith.constant 0 : index
    %3 = vector.load %arg2[%c0_1, %c0_2] : memref<2x768xf32, #tpu.memory_space<vmem>>, vector<2x768xf32>
    tpu.vector_store %arg2[%c0_1, %c0_2], %2 {strides = array<i32>} : memref<2x768xf32, #tpu.memory_space<vmem>>, vector<2x768xf32>,
    return
  }
  func.func @transform_0(%arg0: i32) -> (i32, i32) {
    %c0_i32 = arith.constant 0 : i32
    %c0_i32_0 = arith.constant 0 : i32
    %c0_i32_1 = arith.constant 0 : i32
    return %c0_i32, %c0_i32_0 : i32, i32
  }
  func.func @transform_1(%arg0: i32) -> (i32, i32) {
    %c0_i32 = arith.constant 0 : i32
    %c0_i32_0 = arith.constant 0 : i32
    return %arg0, %c0_i32 : i32, i32
  }
}

</mosaic_0001>

<llo_original>
// kernel: tpu_custom_call.1
$region0: #{tpu_custom_call.1}
  #allocation0 [shape = 'u32[]', space=smem, size = 0x4, offset = 0x4, fixed_abs, tag = 'smem constant byte address 0x4 - core index']
  #allocation1 [shape = 'u32[144,128]{1,0:T(1,128)}', space=vmem, size = 0x12000, scoped, tag = 'internal scratch']
  %s0 = inlined_call_operand.hbm [shape: f32[1,768], index: 0, kind: input, shape index: {}]
  %s1 = inlined_call_operand.hbm [shape: f32[2,768], index: 1, kind: output, shape index: {}]
  %s2 = sld [smem:[#allocation0]]
  $region18: #{tpu_custom_call.1} parent=0
    _
  %s4 = ssub.s32 1, %s2
  %s5 = scalar_select 0, %s4, %s2
  $region1: #{tpu_custom_call.1} parent=0
    #allocation2 [shape = 'u8[3072]{0}', space=vmem, size = 0xc00, scoped, tag = 'input window, operand 0, single buffered']
    #allocation3 [shape = 's32[1]{0}', space=sflag, size = 0x4, scoped, tag = 'scoped memory for tpu_custom_call.1']
    #allocation4 [shape = 's32[1]{0}', space=sflag, size = 0x4, scoped, tag = 'scoped memory for tpu_custom_call.1']
    #allocation5 [shape = 'u8[6144]{0}', space=vmem, size = 0x1800, scoped, tag = 'output window, operand 0, single buffered']
    %6 = vsyncpa [#allocation3], 0
    %7 = vsyncpa [#allocation4], 0
    // Predicated region
    $region2: #{tpu_custom_call.1} parent=1 // pred_check
      _
    $region3: #{tpu_custom_call.1} parent=1 // pred_check_branch
      %9 = sbr.rel (0) target = $region5
    $region4: #{tpu_custom_call.1} parent=1 // pred_region
      %s11 = ssub.s32 96, 96
      %12 = vsyncadd [#allocation3], %s11
      %s14 = sshll.u32 [#allocation2], 4
      %s15 = int_to_ptr.vmem [resolvable:$true] %s14
      %17 = dma.hbm_to_vmem [thread:$0]  %s0, 96, %s15, [#allocation3]
    $region5: #{tpu_custom_call.1} parent=1 // pred_fallthru
      _
    // Predicated region
    $region6: #{tpu_custom_call.1} parent=1 // pred_check
      _
    $region7: #{tpu_custom_call.1} parent=1 // pred_check_branch
      %19 = sbr.rel (0) target = $region9
    $region8: #{tpu_custom_call.1} parent=1 // pred_region
      %20 = dma.done [#allocation3], 96
    $region9: #{tpu_custom_call.1} parent=1 // pred_fallthru
      _
    %v21 = vld [vmem:[#allocation2] sm:$0x3f]
    %v23 = vlaneseq
    %v24 = vshrl.u32 %v23, 7
    %v25 = vsub.s32 0, %v24
    %v26 = vrot.slane %v21, %v25
    %v27 = vlaneseq
    %v28 = vshrl.u32 %v27, 7
    %v29 = vsub.s32 1, %v28
    %v30 = vrot.slane %v21, %v29
    %v31 = vlaneseq
    %v32 = vshrl.u32 %v31, 7
    %v33 = vsub.s32 2, %v32
    %v34 = vrot.slane %v21, %v33
    %v35 = vlaneseq
    %v36 = vshrl.u32 %v35, 7
    %v37 = vsub.s32 3, %v36
    %v38 = vrot.slane %v21, %v37
    %v39 = vlaneseq
    %v40 = vshrl.u32 %v39, 7
    %v41 = vsub.s32 4, %v40
    %v42 = vrot.slane %v21, %v41
    %v43 = vlaneseq
    %v44 = vshrl.u32 %v43, 7
    %v45 = vsub.s32 5, %v44
    %v46 = vrot.slane %v21, %v45
    %v47 = vcombine.low %v26, %v30
    %v48 = vcombine.low %v34, %v38
    %v50 = vunpack.c.l.s4 1983009808
    %v51 = vunpack.c.0.s8 %v50
    %v52 = vlaneseq
    %v53 = vshrl.u32 %v52, 7
    %v54 = vsub.s32 %v51, %v53
    %v55 = vrot.slane %v47, %v54
    %v57 = vunpack.c.l.s4 1983009808
    %v58 = vunpack.c.0.s8 %v57
    %v59 = vlaneseq
    %v60 = vshrl.u32 %v59, 7
    %v61 = vsub.s32 %v58, %v60
    %v62 = vrot.slane %v48, %v61
    %v63 = vcombine.low %v55, %v62
    %v64 = vcombine.low %v42, %v46
    %v66 = vunpack.c.l.s4 1983009808
    %v67 = vunpack.c.0.s8 %v66
    %v68 = vlaneseq
    %v69 = vshrl.u32 %v68, 7
    %v70 = vsub.s32 %v67, %v69
    %v71 = vrot.slane %v64, %v70
    %74 = vst [vmem:[#allocation5] sm:$0xff] %v63
    %75 = vst [vmem:[#allocation5 + $0x8] sm:$0xf] %v71
    // Predicated region
    $region10: #{tpu_custom_call.1} parent=1 // pred_check
      _
    $region11: #{tpu_custom_call.1} parent=1 // pred_check_branch
      %77 = sbr.rel (0) target = $region13
    $region12: #{tpu_custom_call.1} parent=1 // pred_region
      %s79 = ssub.s32 192, 192
      %80 = vsyncadd [#allocation4], %s79
      %s82 = sshll.u32 [#allocation5], 4
      %s83 = int_to_ptr.vmem [resolvable:$true] %s82
      %85 = dma.vmem_to_hbm [thread:$0]  %s83, 192, %s1, [#allocation4]
    $region13: #{tpu_custom_call.1} parent=1 // pred_fallthru
      _
    // Predicated region
    $region14: #{tpu_custom_call.1} parent=1 // pred_check
      _
    $region15: #{tpu_custom_call.1} parent=1 // pred_check_branch
      %87 = sbr.rel (0) target = $region17
    $region16: #{tpu_custom_call.1} parent=1 // pred_region
      %88 = dma.done [#allocation4], 192
    $region17: #{tpu_custom_call.1} parent=1 // pred_fallthru
      _
    %89 = vsyncpa [#allocation3], 1
    %90 = vsyncpa [#allocation4], 1

</llo_original>
